<compile_context>
chip_gen: v7x
topology: tpu7x:2x2x1
jax: 0.10.0
libtpu: 0.0.40
codegen_flags: <defaults>
</compile_context>

<pallas_src>
import functools

import jax
import jax.numpy as jnp
from jax.experimental import pallas as pl
from jax.experimental.pallas import tpu as pltpu


def _classifier_kernel(x_ref, w_ref, b_ref, o_ref, acc_ref, *,
                       input_dim, td, nd):
    # x_ref: (TB, TD) VMEM (native dtype)   w_ref: (1, TD) VMEM (native dtype)
    # b_ref: (1,) SMEM f32                  o_ref: (TB, 1) VMEM f32
    # acc_ref: (TB, ACC_W) f32 VMEM scratch (ACC_W = 128 if TD % 128 == 0 else 1)
    k = pl.program_id(1)
    lanewide = (td % 128 == 0)
    d_ragged = (nd > 1) and (input_dim % td != 0)

    @pl.when(k == 0)
    def _init():
        acc_ref[...] = jnp.zeros_like(acc_ref)

    def accumulate(mask_edge):
        acc = acc_ref[...]
        if lanewide:
            # 128-lane chunks: each chunk is a full vreg column -> pure VPU
            # multiply/add into the lane-wide accumulator, no XLU per step.
            for c in range(td // 128):
                sl = slice(c * 128, (c + 1) * 128)
                pc = (x_ref[:, sl].astype(jnp.float32)
                      * w_ref[:, sl].astype(jnp.float32))
                if mask_edge:
                    col = (k * td + c * 128
                           + jax.lax.broadcasted_iota(jnp.int32, pc.shape, 1))
                    pc = jnp.where(col < input_dim, pc, 0.0)
                acc = acc + pc
        else:
            # Only reached when nd == 1 and TD < / not multiple of 128: a
            # single cross-lane reduce for the whole kernel is negligible.
            pc = (x_ref[...].astype(jnp.float32)
                  * w_ref[...].astype(jnp.float32))
            if mask_edge:
                col = (k * td
                       + jax.lax.broadcasted_iota(jnp.int32, pc.shape, 1))
                pc = jnp.where(col < input_dim, pc, 0.0)
            acc = acc + jnp.sum(pc, axis=-1, keepdims=True)
        acc_ref[...] = acc

    if d_ragged:
        # Steady-state tiles stay mask-free; only the last (ragged) D tile
        # pays for the lane mask.
        @pl.when(k < nd - 1)
        def _steady():
            accumulate(False)

        @pl.when(k == nd - 1)
        def _edge():
            accumulate(True)
    else:
        accumulate(False)

    @pl.when(k == nd - 1)
    def _finalize():
        acc = acc_ref[...]
        if lanewide:
            total = jnp.sum(acc, axis=-1, keepdims=True)   # single XLU reduce
        else:
            total = acc
        y = total + b_ref[0]                               # scalar bias (SMEM)
        o_ref[...] = jax.nn.sigmoid(y).astype(o_ref.dtype)


def _cdiv(a, m):
    return -(-a // m)


def _round_up(a, m):
    return ((a + m - 1) // m) * m


@functools.partial(jax.jit, static_argnames=("block_batch", "block_dim"))
def activation_classifier(x, w, b, *, block_batch=512, block_dim=4096):
    """sigmoid(x @ w + b).

    x: (batch, input_dim)  f32 or bf16 (streamed in native dtype)
    w: (input_dim, 1)      f32 or bf16 (transpose of torch Linear weight)
    b: (1,)
    returns: (batch, 1)    f32
    """
    batch, input_dim = x.shape
    assert block_batch % 8 == 0, "block_batch must be a multiple of 8"
    assert block_dim % 128 == 0, "block_dim must be a multiple of 128"

    # Keep x / w in their native dtype (bf16 streaming halves HBM bytes read);
    # the kernel up-casts to f32 in VMEM.  Bias is one scalar -> f32 SMEM.
    w_row = w.reshape(1, input_dim)
    b = b.reshape(1).astype(jnp.float32)

    # --- batch tiling: multiple of 8 (or full extent); aim for >= 2 tiles so
    #     the "parallel" axis can be sharded across v7x's 2 TensorCores.
    if batch > block_batch:
        tb = block_batch
    else:
        half = _round_up(_cdiv(batch, 2), 8)
        tb = half if half < batch else batch
    nb = _cdiv(batch, tb)

    # --- reduction (D) tiling: full extent if it fits, else block_dim tiles.
    td = input_dim if input_dim <= block_dim else block_dim
    nd = _cdiv(input_dim, td)

    # Pad only the tiny weight row so its blocks are never ragged.  x stays
    # un-padded (no extra HBM read+write pass): its ragged D edge is masked
    # in-kernel, its ragged batch edge rows are dropped by masked stores.
    if nd * td != input_dim:
        w_row = jnp.pad(w_row, ((0, 0), (0, nd * td - input_dim)))

    acc_w = 128 if td % 128 == 0 else 1

    kernel = functools.partial(
        _classifier_kernel, input_dim=input_dim, td=td, nd=nd)

    cost = pl.CostEstimate(
        flops=2 * batch * input_dim,
        transcendentals=batch,
        bytes_accessed=(x.size * x.dtype.itemsize
                        + w_row.size * w_row.dtype.itemsize
                        + batch * 4 + 4),
    )

    return pl.pallas_call(
        kernel,
        out_shape=jax.ShapeDtypeStruct((batch, 1), jnp.float32),
        grid_spec=pltpu.PrefetchScalarGridSpec(
            num_scalar_prefetch=0,
            grid=(nb, nd),
            in_specs=[
                pl.BlockSpec((tb, td), lambda i, k: (i, k)),        # x tile
                pl.BlockSpec((1, td), lambda i, k: (0, k)),         # w row tile
                pl.BlockSpec(memory_space=pltpu.MemorySpace.SMEM),  # bias
            ],
            out_specs=pl.BlockSpec((tb, 1), lambda i, k: (i, 0)),
            scratch_shapes=[pltpu.VMEM((tb, acc_w), jnp.float32)],
        ),
        compiler_params=pltpu.CompilerParams(
            dimension_semantics=("parallel", "arbitrary"),
            vmem_limit_bytes=48 << 20,
        ),
        cost_estimate=cost,
    )(x, w_row, b)


def reference(x, w, b):
    # Pure-VPU f32 reference (avoids TPU default bf16 matmul precision).
    xf = x.astype(jnp.float32)
    wf = w.astype(jnp.float32).reshape(1, -1)
    logits = jnp.sum(xf * wf, axis=-1, keepdims=True) + b.astype(jnp.float32).reshape(1, 1)
    return jax.nn.sigmoid(logits)


if __name__ == "__main__":
    key = jax.random.PRNGKey(0)
    kx, kw, kb, kx2, kx3 = jax.random.split(key, 5)

    # --- 1) small demo shape matching the module (Linear(input_dim, 1)) ---
    batch, input_dim = 8, 32
    x = jax.random.normal(kx, (batch, input_dim), dtype=jnp.float32)
    bound = 1.0 / (input_dim ** 0.5)
    w = jax.random.uniform(kw, (input_dim, 1), jnp.float32, -bound, bound)
    b = jax.random.uniform(kb, (1,), jnp.float32, -bound, bound)
    out = jax.block_until_ready(activation_classifier(x, w, b))
    assert out.shape == (batch, 1)
    assert jnp.allclose(out, reference(x, w, b), atol=1e-5, rtol=1e-5)

    # --- 2) ragged multi-tile path: un-padded x, masked D edge, batch edge ---
    batch2, input_dim2 = 1030, 300
    x2 = jax.random.normal(kx2, (batch2, input_dim2), dtype=jnp.float32)
    bound2 = 1.0 / (input_dim2 ** 0.5)
    w2 = jax.random.uniform(kw, (input_dim2, 1), jnp.float32, -bound2, bound2)
    b2 = jax.random.uniform(kb, (1,), jnp.float32, -bound2, bound2)
    out2 = jax.block_until_ready(
        activation_classifier(x2, w2, b2, block_batch=512, block_dim=128))
    assert out2.shape == (batch2, 1)
    assert jnp.allclose(out2, reference(x2, w2, b2), atol=1e-5, rtol=1e-4)

    # --- 3) bf16 streaming + megacore batch split (nb = 2) ---
    batch3, input_dim3 = 256, 512
    x3 = jax.random.normal(kx3, (batch3, input_dim3), dtype=jnp.bfloat16)
    bound3 = 1.0 / (input_dim3 ** 0.5)
    w3 = jax.random.uniform(kw, (input_dim3, 1), jnp.float32,
                            -bound3, bound3).astype(jnp.bfloat16)
    b3 = jax.random.uniform(kb, (1,), jnp.float32, -bound3, bound3)
    out3 = jax.block_until_ready(activation_classifier(x3, w3, b3))
    assert out3.shape == (batch3, 1)
    assert jnp.allclose(out3, reference(x3, w3, b3), atol=2e-5, rtol=1e-4)

    print("KERNEL_OK")
</pallas_src>

<mosaic_0001>
module attributes {stable_mosaic.version = 11 : i64} {
  func.func @_classifier_kernel(%arg0: i32, %arg1: i32, %arg2: memref<8x32xf32, #tpu.memory_space<vmem>>, %arg3: memref<1x32xf32, #tpu.memory_space<vmem>>, %arg4: memref<1xf32, #tpu.memory_space<smem>>, %arg5: memref<8x1xf32, #tpu.memory_space<vmem>>, %arg6: memref<8x1xf32, #tpu.memory_space<vmem>>) attributes {dimension_semantics = [#tpu.dimension_semantics<parallel>, #tpu.dimension_semantics<arbitrary>], iteration_bounds = array<i64: 1, 1>, scalar_prefetch = 0 : i64, scratch_operands = 1 : i64, tpu.core_type = #tpu.core_type<tc>, window_params = [{transform_indices = @transform_0, window_bounds = array<i64: 8, 32>}, {transform_indices = @transform_1, window_bounds = array<i64: 1, 32>}, {transform_indices = @transform_2, window_bounds = array<i64: 1>}, {transform_indices = @transform_3, window_bounds = array<i64: 8, 1>}]} {
    %c0_i32 = arith.constant 0 : i32
    %0 = arith.cmpi eq, %arg1, %c0_i32 : i32
    %1 = arith.extui %0 : i1 to i32
    %c0_i32_0 = arith.constant 0 : i32
    %2 = arith.cmpi ne, %1, %c0_i32_0 : i32
    scf.if %2 {
      %cst_10 = arith.constant 0.000000e+00 : f32
      %15 = vector.broadcast %cst_10 : f32 to vector<8x1xf32>
      %c0_11 = arith.constant 0 : index
      %c0_12 = arith.constant 0 : index
      %16 = vector.load %arg6[%c0_11, %c0_12] : memref<8x1xf32, #tpu.memory_space<vmem>>, vector<8x1xf32>
      tpu.vector_store %arg6[%c0_11, %c0_12], %15 {strides = array<i32>} : memref<8x1xf32, #tpu.memory_space<vmem>>, vector<8x1xf32>,
    } else {
    }
    %c0 = arith.constant 0 : index
    %c0_1 = arith.constant 0 : index
    %3 = vector.load %arg6[%c0, %c0_1] : memref<8x1xf32, #tpu.memory_space<vmem>>, vector<8x1xf32>
    %c0_2 = arith.constant 0 : index
    %c0_3 = arith.constant 0 : index
    %4 = vector.load %arg2[%c0_2, %c0_3] : memref<8x32xf32, #tpu.memory_space<vmem>>, vector<8x32xf32>
    %c0_4 = arith.constant 0 : index
    %c0_5 = arith.constant 0 : index
    %5 = vector.load %arg3[%c0_4, %c0_5] : memref<1x32xf32, #tpu.memory_space<vmem>>, vector<1x32xf32>
    %6 = vector.broadcast %5 : vector<1x32xf32> to vector<8x32xf32>
    %7 = arith.mulf %4, %6 : vector<8x32xf32>
    %cst = arith.constant dense<0.000000e+00> : vector<8xf32>
    %8 = vector.multi_reduction <add>, %7, %cst [1] : vector<8x32xf32> to vector<8xf32>
    %9 = vector.shape_cast %8 : vector<8xf32> to vector<8x1xf32>
    %10 = arith.addf %3, %9 : vector<8x1xf32>
    %c0_6 = arith.constant 0 : index
    %c0_7 = arith.constant 0 : index
    %11 = vector.load %arg6[%c0_6, %c0_7] : memref<8x1xf32, #tpu.memory_space<vmem>>, vector<8x1xf32>
    tpu.vector_store %arg6[%c0_6, %c0_7], %10 {strides = array<i32>} : memref<8x1xf32, #tpu.memory_space<vmem>>, vector<8x1xf32>,
    %c0_i32_8 = arith.constant 0 : i32
    %12 = arith.cmpi eq, %arg1, %c0_i32_8 : i32
    %13 = arith.extui %12 : i1 to i32
    %c0_i32_9 = arith.constant 0 : i32
    %14 = arith.cmpi ne, %13, %c0_i32_9 : i32
    scf.if %14 {
      %c0_10 = arith.constant 0 : index
      %c0_11 = arith.constant 0 : index
      %15 = vector.load %arg6[%c0_10, %c0_11] : memref<8x1xf32, #tpu.memory_space<vmem>>, vector<8x1xf32>
      %c0_12 = arith.constant 0 : index
      %16 = memref.load %arg4[%c0_12] : memref<1xf32, #tpu.memory_space<smem>>
      %17 = vector.broadcast %16 : f32 to vector<8x1xf32>
      %18 = arith.addf %15, %17 : vector<8x1xf32>
      %19 = arith.negf %18 : vector<8x1xf32>
      %20 = math.exp %19 : vector<8x1xf32>
      %cst_13 = arith.constant 1.000000e+00 : f32
      %21 = vector.broadcast %cst_13 : f32 to vector<8x1xf32>
      %22 = arith.addf %21, %20 : vector<8x1xf32>
      %23 = arith.divf %21, %22 : vector<8x1xf32>
      %c0_14 = arith.constant 0 : index
      %c0_15 = arith.constant 0 : index
      %24 = vector.load %arg5[%c0_14, %c0_15] : memref<8x1xf32, #tpu.memory_space<vmem>>, vector<8x1xf32>
      tpu.vector_store %arg5[%c0_14, %c0_15], %23 {strides = array<i32>} : memref<8x1xf32, #tpu.memory_space<vmem>>, vector<8x1xf32>,
    } else {
    }
    return
  }
  func.func @transform_0(%arg0: i32, %arg1: i32) -> (i32, i32) {
    %c0_i32 = arith.constant 0 : i32
    return %arg0, %arg1 : i32, i32
  }
  func.func @transform_1(%arg0: i32, %arg1: i32) -> (i32, i32) {
    %c0_i32 = arith.constant 0 : i32
    %c0_i32_0 = arith.constant 0 : i32
    return %c0_i32, %arg1 : i32, i32
  }
  func.func @transform_2(%arg0: i32, %arg1: i32) -> i32 {
    %c0_i32 = arith.constant 0 : i32
    %c0_i32_0 = arith.constant 0 : i32
    return %c0_i32 : i32
  }
  func.func @transform_3(%arg0: i32, %arg1: i32) -> (i32, i32) {
    %c0_i32 = arith.constant 0 : i32
    %c0_i32_0 = arith.constant 0 : i32
    return %arg0, %c0_i32 : i32, i32
  }
}

</mosaic_0001>

<llo_original>
// kernel: activation_classifier.1
$region0: #{activation_classifier.1}
  #allocation0 [shape = 'u32[]', space=smem, size = 0x4, offset = 0x4, fixed_abs, tag = 'smem constant byte address 0x4 - core index']
  #allocation1 [shape = 'u32[144,128]{1,0:T(1,128)}', space=vmem, size = 0x12000, scoped, tag = 'internal scratch']
  #allocation2 [shape = 'f32[8,1]{1,0:T(8,128)}', space=vmem, size = 0x1000, scoped, tag = 'scratch operand']
  #allocation3 [shape = 'f32[1]{0:T(128)S(6)}', space=smem, size = 0x200, scoped, tag = 'scoped memory for activation_classifier.1']
  %s0 = inlined_call_operand.hbm [shape: f32[8,32], index: 0, kind: input, shape index: {}]
  %s1 = inlined_call_operand.vmem [shape: f32[1,32], index: 1, kind: input, shape index: {}]
  %s2 = inlined_call_operand.<no memory space> [shape: f32[1], index: 2, kind: input, shape index: {}]
  %s3 = inlined_call_operand.vmem [shape: f32[8,1], index: 3, kind: output, shape index: {}]
  %s4 = sld [smem:[#allocation0]]
  $region34: #{activation_classifier.1} parent=0
    _
  %s6 = ssub.s32 1, %s4
  %s7 = scalar_select 0, %s6, %s4
  %8 = sst [smem:[#allocation3]] %s2
  $region1: #{activation_classifier.1} parent=0
    #allocation4 [shape = 'u8[4096]{0}', space=vmem, size = 0x1000, scoped, tag = 'input window, operand 0, single buffered']
    #allocation5 [shape = 's32[1]{0}', space=sflag, size = 0x4, scoped, tag = 'scoped memory for activation_classifier.1']
    %9 = vsyncpa [#allocation5], 0
    // Predicated region
    $region2: #{activation_classifier.1} parent=1 // pred_check
      _
    $region3: #{activation_classifier.1} parent=1 // pred_check_branch
      %11 = sbr.rel (0) target = $region5
    $region4: #{activation_classifier.1} parent=1 // pred_region
      %s13 = ssub.s32 128, 128
      %14 = vsyncadd [#allocation5], %s13
      %s16 = sshll.u32 [#allocation4], 4
      %s17 = int_to_ptr.vmem [resolvable:$true] %s16
      %19 = dma.hbm_to_vmem [thread:$0]  %s0, 128, %s17, [#allocation5]
    $region5: #{activation_classifier.1} parent=1 // pred_fallthru
      _
    // Predicated region
    $region6: #{activation_classifier.1} parent=1 // pred_check
      _
    $region7: #{activation_classifier.1} parent=1 // pred_check_branch
      %21 = sbr.rel (0) target = $region9
    $region8: #{activation_classifier.1} parent=1 // pred_region
      _
    $region9: #{activation_classifier.1} parent=1 // pred_fallthru
      _
    // Predicated region
    $region10: #{activation_classifier.1} parent=1 // pred_check
      _
    $region11: #{activation_classifier.1} parent=1 // pred_check_branch
      %23 = sbr.rel (0) target = $region13
    $region12: #{activation_classifier.1} parent=1 // pred_region
      _
    $region13: #{activation_classifier.1} parent=1 // pred_fallthru
      _
    // Predicated region
    $region14: #{activation_classifier.1} parent=1 // pred_check
      _
    $region15: #{activation_classifier.1} parent=1 // pred_check_branch
      %25 = sbr.rel (0) target = $region17
    $region16: #{activation_classifier.1} parent=1 // pred_region
      %26 = dma.done [#allocation5], 128
    $region17: #{activation_classifier.1} parent=1 // pred_fallthru
      _
    %p27 = scmp.eq.s32.totalorder 0, 0
    // Predicated region
    $region18: #{activation_classifier.1} parent=1 // pred_check
      %p28 = pneg %p27
    $region19: #{activation_classifier.1} parent=1 // pred_check_branch
      %30 = sbr.rel (%p28) target = $region21
    $region20: #{activation_classifier.1} parent=1 // pred_region
      %vm31 = vcmask 7168
      %32 = vst.msk [vmem:[#allocation2] sm:$0xff] %vm31, 0.0
    $region21: #{activation_classifier.1} parent=1 // pred_fallthru
      _
    %v33 = vld [vmem:[#allocation2] sm:$0xff]
    %v34 = vld [vmem:[#allocation4] sm:$0xff]
    %v35 = vld [vmem:[%s1] sm:$0x1]
    %v37 = vlaneseq
    %v38 = vshrl.u32 %v37, 7
    %v39 = vsub.s32 0, %v38
    %v40 = vrot.slane %v35, %v39
    %v42 = vmul.f32 %v34, %v40
    %vm43 = vcmask 261120
    %v44 = vsel %vm43, %v42, 0.0
    %45 = vadd.xlane.f32.xlu0 %v44
    %v46 = vpop.xlane.xlu0 %45
    %v47 = vadd.f32 %v33, %v46
    %vm48 = vcmask 7168
    %49 = vst.msk [vmem:[#allocation2] sm:$0xff] %vm48, %v47
    // Predicated region
    $region22: #{activation_classifier.1} parent=1 // pred_check
      %p50 = pneg %p27
    $region23: #{activation_classifier.1} parent=1 // pred_check_branch
      %52 = sbr.rel (%p50) target = $region25
    $region24: #{activation_classifier.1} parent=1 // pred_region
      %v53 = vld [vmem:[#allocation2] sm:$0xff]
      %s54 = sld [smem:[#allocation3]]
      %v55 = vstv %s54
      %v56 = vadd.f32 %v53, %v55
      %v57 = vxor.u32 %v56, 2147483648
      %v58 = vmul.f32 %v57, 1.442695
      %v59 = vpow.pop %v58
      %v60 = vadd.f32 %v59, 1.0
      %v61 = vrcp.pop %v60
      %v62 = vmul.f32 1.0, %v61
      %63 = vst.msk [vmem:[%s3] sm:$0xff] %vm48, %v62
    $region25: #{activation_classifier.1} parent=1 // pred_fallthru
      _
    // Predicated region
    $region26: #{activation_classifier.1} parent=1 // pred_check
      _
    $region27: #{activation_classifier.1} parent=1 // pred_check_branch
      %65 = sbr.rel (0) target = $region29
    $region28: #{activation_classifier.1} parent=1 // pred_region
      _
    $region29: #{activation_classifier.1} parent=1 // pred_fallthru
      _
    // Predicated region
    $region30: #{activation_classifier.1} parent=1 // pred_check
      _
    $region31: #{activation_classifier.1} parent=1 // pred_check_branch
      %67 = sbr.rel (0) target = $region33
    $region32: #{activation_classifier.1} parent=1 // pred_region
      _
    $region33: #{activation_classifier.1} parent=1 // pred_fallthru
      _
    %68 = vsyncpa [#allocation5], 1

</llo_original>
